<compile_context>
chip_gen: v7x
topology: tpu7x:2x2x1
jax: 0.10.0
libtpu: 0.0.40
codegen_flags: <defaults>
</compile_context>

<pallas_src>
import functools

import jax
import jax.numpy as jnp
from jax.experimental import pallas as pl
from jax.experimental.pallas import tpu as pltpu


def _round_up(n: int, m: int) -> int:
    return ((n + m - 1) // m) * m


def _choose_tile(batch: int, block_b: int):
    """Pick a lane-aligned batch tile (last dim of every block)."""
    if batch <= block_b:
        # Prefer two lane-aligned tiles so both v7x TensorCores get work;
        # fall back to a single full-array block when the batch is too small
        # to split into 128-lane-aligned halves.
        half = _round_up(pl.cdiv(batch, 2), 128)
        tb = half if half < batch else batch
    else:
        tb = _round_up(block_b, 128)
    return tb, (pl.cdiv(batch, tb),)


def _in_specs(state_size: int, tb: int, w1, b1, w2, b2):
    return [
        # x^T streams over the batch grid; batch on the lane axis.
        pl.BlockSpec((state_size, tb), lambda i: (0, i)),
        # Weights/biases: same block every step -> VMEM-resident, one DMA.
        pl.BlockSpec(w1.shape, lambda i: (0, 0)),
        pl.BlockSpec(b1.shape, lambda i: (0, 0)),
        pl.BlockSpec(w2.shape, lambda i: (0, 0)),
        pl.BlockSpec(b2.shape, lambda i: (0, 0)),
    ]


def _qnet_math(x_ref, w1_ref, b1_ref, w2_ref, b2_ref):
    """Q^T = W2 @ relu(W1 @ x^T + b1) + b2, returned as f32 (A, tb)."""
    # Feed MXU operands in the stored weight dtype (bf16 or f32); accumulate
    # in f32; keep the bias-add / ReLU epilogue in f32.
    x = x_ref[...].astype(w1_ref.dtype)
    h = jnp.dot(w1_ref[...], x, preferred_element_type=jnp.float32)
    h = jnp.maximum(h + b1_ref[...].astype(jnp.float32), 0.0)
    q = jnp.dot(w2_ref[...], h.astype(w2_ref.dtype),
                preferred_element_type=jnp.float32)
    return q + b2_ref[...].astype(jnp.float32)


def qnet_forward_kernel(x_ref, w1_ref, b1_ref, w2_ref, b2_ref, o_ref):
    o_ref[...] = _qnet_math(x_ref, w1_ref, b1_ref, w2_ref, b2_ref).astype(
        o_ref.dtype)


def qnet_greedy_kernel(x_ref, w1_ref, b1_ref, w2_ref, b2_ref, a_ref):
    q = _qnet_math(x_ref, w1_ref, b1_ref, w2_ref, b2_ref)        # (A, tb) f32
    # First action index attaining the per-column max (ties -> lowest index).
    idx = jax.lax.broadcasted_iota(jnp.int32, q.shape, 0)
    qmax = jnp.max(q, axis=0, keepdims=True)
    a_ref[...] = jnp.min(
        jnp.where(q >= qmax, idx, jnp.int32(2 ** 31 - 1)),
        axis=0, keepdims=True)


@functools.partial(jax.jit, static_argnames=("block_b",))
def qnet_forward_t(x_t, w1, b1, w2, b2, *, block_b: int = 32768):
    """Lane-dense forward: x_t is (state_size, B); returns Q^T of shape (A, B)."""
    state_size, batch = x_t.shape
    hidden_dim = w1.shape[0]
    action_size = w2.shape[0]
    assert w1.shape == (hidden_dim, state_size) and b1.shape == (hidden_dim, 1)
    assert w2.shape == (action_size, hidden_dim) and b2.shape == (action_size, 1)

    tb, grid = _choose_tile(batch, block_b)

    return pl.pallas_call(
        qnet_forward_kernel,
        out_shape=jax.ShapeDtypeStruct((action_size, batch), x_t.dtype),
        grid=grid,
        in_specs=_in_specs(state_size, tb, w1, b1, w2, b2),
        out_specs=pl.BlockSpec((action_size, tb), lambda i: (0, i)),
        compiler_params=pltpu.CompilerParams(
            dimension_semantics=("parallel",)),
    )(x_t, w1, b1, w2, b2)


@functools.partial(jax.jit, static_argnames=("block_b",))
def qnet_greedy_action_t(x_t, w1, b1, w2, b2, *, block_b: int = 32768):
    """Fused DQN action selection: x_t (state_size, B) -> int32 actions (B,)."""
    state_size, batch = x_t.shape
    tb, grid = _choose_tile(batch, block_b)

    act = pl.pallas_call(
        qnet_greedy_kernel,
        out_shape=jax.ShapeDtypeStruct((1, batch), jnp.int32),
        grid=grid,
        in_specs=_in_specs(state_size, tb, w1, b1, w2, b2),
        out_specs=pl.BlockSpec((1, tb), lambda i: (0, i)),
        compiler_params=pltpu.CompilerParams(
            dimension_semantics=("parallel",)),
    )(x_t, w1, b1, w2, b2)
    return act[0]


def qnet_forward(x, w1, b1, w2, b2, *, block_b: int = 32768):
    """Module-compatible interface: x (B, state_size) -> Q-values (B, action_size).

    TODO(synk): store the replay buffer directly as (state_size, B) and call
    qnet_forward_t / qnet_greedy_action_t so these wrapper transposes vanish.
    """
    return qnet_forward_t(x.T, w1, b1, w2, b2, block_b=block_b).T


def init_qnet_params(key, state_size, hidden_dim, action_size,
                     dtype=jnp.float32):
    """Mimics PyTorch nn.Linear default init (uniform +-1/sqrt(fan_in))."""
    k1, k2, k3, k4 = jax.random.split(key, 4)
    bound1 = 1.0 / (state_size ** 0.5)
    bound2 = 1.0 / (hidden_dim ** 0.5)
    # PyTorch-native layout: W (out, in); bias kept 2D as (out, 1).
    w1 = jax.random.uniform(k1, (hidden_dim, state_size), jnp.float32,
                            -bound1, bound1).astype(dtype)
    b1 = jax.random.uniform(k2, (hidden_dim, 1), jnp.float32,
                            -bound1, bound1).astype(dtype)
    w2 = jax.random.uniform(k3, (action_size, hidden_dim), jnp.float32,
                            -bound2, bound2).astype(dtype)
    b2 = jax.random.uniform(k4, (action_size, 1), jnp.float32,
                            -bound2, bound2).astype(dtype)
    return w1, b1, w2, b2


def qnet_reference(x, w1, b1, w2, b2):
    x = x.astype(jnp.float32)
    w1, b1 = w1.astype(jnp.float32), b1.astype(jnp.float32)
    w2, b2 = w2.astype(jnp.float32), b2.astype(jnp.float32)
    h = jnp.maximum(x @ w1.T + b1.T, 0.0)
    return h @ w2.T + b2.T


if __name__ == "__main__":
    key = jax.random.PRNGKey(0)
    kx, kx2, kp = jax.random.split(key, 3)

    # Typical DQN sizes (e.g. CartPole): state_size=4, hidden_dim=32, action_size=2.
    batch, state_size, hidden_dim, action_size = 8, 4, 32, 2
    w1, b1, w2, b2 = init_qnet_params(kp, state_size, hidden_dim, action_size)

    # --- small-batch f32 check via the module-compatible (B, S) interface ---
    x = jax.random.normal(kx, (batch, state_size), dtype=jnp.float32)
    out = jax.block_until_ready(qnet_forward(x, w1, b1, w2, b2))
    ref = qnet_reference(x, w1, b1, w2, b2)
    assert out.shape == (batch, action_size)
    assert jnp.allclose(out, ref, atol=1e-5, rtol=1e-5), "f32 mismatch vs reference"

    # --- lane-dense path: multi-tile grid + ragged last block, no padding ---
    big_b = 300                      # -> tb=256, grid=2, ragged tail of 44 cols
    x_big_t = jax.random.normal(kx2, (state_size, big_b), dtype=jnp.float32)
    out_big = jax.block_until_ready(qnet_forward_t(x_big_t, w1, b1, w2, b2))
    ref_big = qnet_reference(x_big_t.T, w1, b1, w2, b2)
    assert out_big.shape == (action_size, big_b)
    assert jnp.allclose(out_big.T, ref_big, atol=1e-5, rtol=1e-5), \
        "tiled mismatch vs reference"

    # --- bf16-stored weights (bf16 MXU operands, f32 accumulate/epilogue) ---
    w1b, b1b, w2b, b2b = init_qnet_params(kp, state_size, hidden_dim,
                                          action_size, dtype=jnp.bfloat16)
    out_bf = jax.block_until_ready(qnet_forward(x, w1b, b1b, w2b, b2b))
    ref_bf = qnet_reference(x, w1b, b1b, w2b, b2b)
    assert jnp.allclose(out_bf, ref_bf, atol=5e-2, rtol=5e-2), \
        "bf16 mismatch vs reference"

    # --- fused greedy action (argmax over actions inside the kernel) ---
    act = jax.block_until_ready(qnet_greedy_action_t(x_big_t, w1, b1, w2, b2))
    ref_act = jnp.argmax(ref_big, axis=-1).astype(jnp.int32)
    assert act.shape == (big_b,)
    assert jnp.array_equal(act, ref_act), "greedy action mismatch"

    print("KERNEL_OK")
</pallas_src>

<mosaic_0001>
module attributes {stable_mosaic.version = 11 : i64} {
  func.func @qnet_forward_kernel(%arg0: i32, %arg1: memref<4x8xf32, #tpu.memory_space<vmem>>, %arg2: memref<32x4xf32, #tpu.memory_space<vmem>>, %arg3: memref<32x1xf32, #tpu.memory_space<vmem>>, %arg4: memref<2x32xf32, #tpu.memory_space<vmem>>, %arg5: memref<2x1xf32, #tpu.memory_space<vmem>>, %arg6: memref<2x8xf32, #tpu.memory_space<vmem>>) attributes {dimension_semantics = [#tpu.dimension_semantics<parallel>], iteration_bounds = array<i64: 1>, scalar_prefetch = 0 : i64, scratch_operands = 0 : i64, tpu.core_type = #tpu.core_type<tc>, window_params = [{transform_indices = @transform_0, window_bounds = array<i64: 4, 8>}, {pipeline_mode = #tpu.pipeline_mode<synchronous>, transform_indices = @transform_1, window_bounds = array<i64: 32, 4>}, {pipeline_mode = #tpu.pipeline_mode<synchronous>, transform_indices = @transform_2, window_bounds = array<i64: 32, 1>}, {pipeline_mode = #tpu.pipeline_mode<synchronous>, transform_indices = @transform_3, window_bounds = array<i64: 2, 32>}, {pipeline_mode = #tpu.pipeline_mode<synchronous>, transform_indices = @transform_4, window_bounds = array<i64: 2, 1>}, {transform_indices = @transform_5, window_bounds = array<i64: 2, 8>}]} {
    %c0 = arith.constant 0 : index
    %c0_0 = arith.constant 0 : index
    %0 = vector.load %arg1[%c0, %c0_0] : memref<4x8xf32, #tpu.memory_space<vmem>>, vector<4x8xf32>
    %c0_1 = arith.constant 0 : index
    %c0_2 = arith.constant 0 : index
    %1 = vector.load %arg2[%c0_1, %c0_2] : memref<32x4xf32, #tpu.memory_space<vmem>>, vector<32x4xf32>
    %cst = arith.constant dense<0.000000e+00> : vector<32x8xf32>
    %2 = tpu.matmul %1, %0, %cst {dimension_numbers = #tpu.dot_dimension_numbers<[1], [0], [0], [1], [0, 0, 1, 1], [], []>} : vector<32x4xf32>, vector<4x8xf32>, vector<32x8xf32> -> vector<32x8xf32>
    %c0_3 = arith.constant 0 : index
    %c0_4 = arith.constant 0 : index
    %3 = vector.load %arg3[%c0_3, %c0_4] : memref<32x1xf32, #tpu.memory_space<vmem>>, vector<32x1xf32>
    %4 = vector.broadcast %3 : vector<32x1xf32> to vector<32x8xf32>
    %5 = arith.addf %2, %4 : vector<32x8xf32>
    %cst_5 = arith.constant 0.000000e+00 : f32
    %6 = vector.broadcast %cst_5 : f32 to vector<32x8xf32>
    %7 = arith.maximumf %5, %6 : vector<32x8xf32>
    %c0_6 = arith.constant 0 : index
    %c0_7 = arith.constant 0 : index
    %8 = vector.load %arg4[%c0_6, %c0_7] : memref<2x32xf32, #tpu.memory_space<vmem>>, vector<2x32xf32>
    %cst_8 = arith.constant dense<0.000000e+00> : vector<2x8xf32>
    %9 = tpu.matmul %8, %7, %cst_8 {dimension_numbers = #tpu.dot_dimension_numbers<[1], [0], [0], [1], [0, 0, 1, 1], [], []>} : vector<2x32xf32>, vector<32x8xf32>, vector<2x8xf32> -> vector<2x8xf32>
    %c0_9 = arith.constant 0 : index
    %c0_10 = arith.constant 0 : index
    %10 = vector.load %arg5[%c0_9, %c0_10] : memref<2x1xf32, #tpu.memory_space<vmem>>, vector<2x1xf32>
    %11 = vector.broadcast %10 : vector<2x1xf32> to vector<2x8xf32>
    %12 = arith.addf %9, %11 : vector<2x8xf32>
    %c0_11 = arith.constant 0 : index
    %c0_12 = arith.constant 0 : index
    %13 = vector.load %arg6[%c0_11, %c0_12] : memref<2x8xf32, #tpu.memory_space<vmem>>, vector<2x8xf32>
    tpu.vector_store %arg6[%c0_11, %c0_12], %12 {strides = array<i32>} : memref<2x8xf32, #tpu.memory_space<vmem>>, vector<2x8xf32>,
    return
  }
  func.func @transform_0(%arg0: i32) -> (i32, i32) {
    %c0_i32 = arith.constant 0 : i32
    %c0_i32_0 = arith.constant 0 : i32
    return %c0_i32, %arg0 : i32, i32
  }
  func.func @transform_1(%arg0: i32) -> (i32, i32) {
    %c0_i32 = arith.constant 0 : i32
    %c0_i32_0 = arith.constant 0 : i32
    %c0_i32_1 = arith.constant 0 : i32
    return %c0_i32, %c0_i32_0 : i32, i32
  }
  func.func @transform_2(%arg0: i32) -> (i32, i32) {
    %c0_i32 = arith.constant 0 : i32
    %c0_i32_0 = arith.constant 0 : i32
    %c0_i32_1 = arith.constant 0 : i32
    return %c0_i32, %c0_i32_0 : i32, i32
  }
  func.func @transform_3(%arg0: i32) -> (i32, i32) {
    %c0_i32 = arith.constant 0 : i32
    %c0_i32_0 = arith.constant 0 : i32
    %c0_i32_1 = arith.constant 0 : i32
    return %c0_i32, %c0_i32_0 : i32, i32
  }
  func.func @transform_4(%arg0: i32) -> (i32, i32) {
    %c0_i32 = arith.constant 0 : i32
    %c0_i32_0 = arith.constant 0 : i32
    %c0_i32_1 = arith.constant 0 : i32
    return %c0_i32, %c0_i32_0 : i32, i32
  }
  func.func @transform_5(%arg0: i32) -> (i32, i32) {
    %c0_i32 = arith.constant 0 : i32
    %c0_i32_0 = arith.constant 0 : i32
    return %c0_i32, %arg0 : i32, i32
  }
}

</mosaic_0001>

<llo_original>
// kernel: qnet_forward_t.1
$region0: #{qnet_forward_t.1}
  #allocation0 [shape = 'u32[]', space=smem, size = 0x4, offset = 0x4, fixed_abs, tag = 'smem constant byte address 0x4 - core index']
  #allocation1 [shape = 'u32[144,128]{1,0:T(1,128)}', space=vmem, size = 0x12000, scoped, tag = 'internal scratch']
  %s0 = inlined_call_operand.vmem [shape: f32[4,8], index: 0, kind: input, shape index: {}]
  %s1 = inlined_call_operand.vmem [shape: f32[32,4], index: 1, kind: input, shape index: {}]
  %s2 = inlined_call_operand.vmem [shape: f32[32,1], index: 2, kind: input, shape index: {}]
  %s3 = inlined_call_operand.vmem [shape: f32[2,32], index: 3, kind: input, shape index: {}]
  %s4 = inlined_call_operand.vmem [shape: f32[2,1], index: 4, kind: input, shape index: {}]
  %s5 = inlined_call_operand.hbm [shape: f32[2,8], index: 5, kind: output, shape index: {}]
  %s6 = sld [smem:[#allocation0]]
  $region30: #{qnet_forward_t.1} parent=0
    _
  %s8 = ssub.s32 1, %s6
  %s9 = scalar_select 0, %s8, %s6
  $region1: #{qnet_forward_t.1} parent=0
    #allocation2 [shape = 'u8[1024]{0}', space=vmem, size = 0x400, scoped, tag = 'output window, operand 0, single buffered']
    #allocation3 [shape = 's32[1]{0}', space=sflag, size = 0x4, scoped, tag = 'scoped memory for qnet_forward_t.1']
    %10 = vsyncpa [#allocation3], 0
    // Predicated region
    $region2: #{qnet_forward_t.1} parent=1 // pred_check
      _
    $region3: #{qnet_forward_t.1} parent=1 // pred_check_branch
      %12 = sbr.rel (0) target = $region5
    $region4: #{qnet_forward_t.1} parent=1 // pred_region
      _
    $region5: #{qnet_forward_t.1} parent=1 // pred_fallthru
      _
    // Predicated region
    $region6: #{qnet_forward_t.1} parent=1 // pred_check
      _
    $region7: #{qnet_forward_t.1} parent=1 // pred_check_branch
      %14 = sbr.rel (0) target = $region9
    $region8: #{qnet_forward_t.1} parent=1 // pred_region
      _
    $region9: #{qnet_forward_t.1} parent=1 // pred_fallthru
      _
    // Predicated region
    $region10: #{qnet_forward_t.1} parent=1 // pred_check
      _
    $region11: #{qnet_forward_t.1} parent=1 // pred_check_branch
      %16 = sbr.rel (0) target = $region13
    $region12: #{qnet_forward_t.1} parent=1 // pred_region
      _
    $region13: #{qnet_forward_t.1} parent=1 // pred_fallthru
      _
    // Predicated region
    $region14: #{qnet_forward_t.1} parent=1 // pred_check
      _
    $region15: #{qnet_forward_t.1} parent=1 // pred_check_branch
      %18 = sbr.rel (0) target = $region17
    $region16: #{qnet_forward_t.1} parent=1 // pred_region
      _
    $region17: #{qnet_forward_t.1} parent=1 // pred_fallthru
      _
    // Predicated region
    $region18: #{qnet_forward_t.1} parent=1 // pred_check
      _
    $region19: #{qnet_forward_t.1} parent=1 // pred_check_branch
      %20 = sbr.rel (0) target = $region21
    $region20: #{qnet_forward_t.1} parent=1 // pred_region
      _
    $region21: #{qnet_forward_t.1} parent=1 // pred_fallthru
      _
    %v21 = vld [vmem:[%s0] sm:$0xf]
    %v22 = vld [vmem:[%s1] sm:$0xff]
    %v23 = vld [vmem:[%s1 + $0x8] sm:$0xff]
    %v24 = vld [vmem:[%s1 + $0x10] sm:$0xff]
    %v25 = vld [vmem:[%s1 + $0x18] sm:$0xff]
    %v26 = vld [vmem:[%s2] sm:$0xff]
    %v27 = vld [vmem:[%s2 + $0x8] sm:$0xff]
    %v28 = vld [vmem:[%s2 + $0x10] sm:$0xff]
    %v29 = vld [vmem:[%s2 + $0x18] sm:$0xff]
    %31 = vset.pattern.permute.xlu0 0
    %32 = vperm.xlu0 %31, %v26
    %v33 = vpop.permute.xlu0 %32
    %36 = vset.pattern.permute.xlu0 0
    %37 = vperm.xlu0 %36, %v27
    %v38 = vpop.permute.xlu0 %37
    %41 = vset.pattern.permute.xlu0 0
    %42 = vperm.xlu0 %41, %v28
    %v43 = vpop.permute.xlu0 %42
    %46 = vset.pattern.permute.xlu0 0
    %47 = vperm.xlu0 %46, %v29
    %v48 = vpop.permute.xlu0 %47
    %vm50 = vcmask 31744
    %v52 = vsel %vm50, %v22, 0
    %v55 = vsel %vm50, %v23, 0
    %v58 = vsel %vm50, %v24, 0
    %v61 = vsel %vm50, %v25, 0
    %vm63 = vcmask 1043456
    %v65 = vsel %vm63, %v21, 0
    %67 = vmatprep.subr.mxu0 0.0
    %68 = vmatpush1.msra.mxu0 %v65
    %69 = vmatprep.subr.mxu0 0.0
    %70 = vmatpush1.msra.mxu0 0.0
    %71 = vmatprep.subr.mxu0 0.0
    %72 = vmatpush1.msra.mxu0 0.0
    %73 = vmatprep.subr.mxu0 0.0
    %74 = vmatpush1.msra.mxu0 0.0
    %75 = vmatprep.subr.mxu0 0.0
    %76 = vmatpush1.msra.mxu0 0.0
    %77 = vmatprep.subr.mxu0 0.0
    %78 = vmatpush1.msra.mxu0 0.0
    %79 = vmatprep.subr.mxu0 0.0
    %80 = vmatpush1.msra.mxu0 0.0
    %81 = vmatprep.subr.mxu0 0.0
    %82 = vmatpush1.msra.mxu0 0.0
    %83 = vmatprep.subr.mxu0 0.0
    %84 = vmatpush1.msra.mxu0 0.0
    %85 = vmatprep.subr.mxu0 0.0
    %86 = vmatpush1.msra.mxu0 0.0
    %87 = vmatprep.subr.mxu0 0.0
    %88 = vmatpush1.msra.mxu0 0.0
    %89 = vmatprep.subr.mxu0 0.0
    %90 = vmatpush1.msra.mxu0 0.0
    %91 = vmatprep.subr.mxu0 0.0
    %92 = vmatpush1.msra.mxu0 0.0
    %93 = vmatprep.subr.mxu0 0.0
    %94 = vmatpush1.msra.mxu0 0.0
    %95 = vmatprep.subr.mxu0 0.0
    %96 = vmatpush1.msra.mxu0 0.0
    %97 = vmatprep.subr.mxu0 0.0
    %98 = vmatpush1.msra.mxu0 0.0
    %99 = vmatprep.subr.mxu0 0.0
    %100 = vmatpush1.msra.mxu0 0.0
    %101 = vmatprep.subr.mxu0 0.0
    %102 = vmatpush1.msra.mxu0 0.0
    %103 = vmatprep.subr.mxu0 0.0
    %104 = vmatpush1.msra.mxu0 0.0
    %105 = vmatprep.subr.mxu0 0.0
    %106 = vmatpush1.msra.mxu0 0.0
    %107 = vmatprep.subr.mxu0 0.0
    %108 = vmatpush1.msra.mxu0 0.0
    %109 = vmatprep.subr.mxu0 0.0
    %110 = vmatpush1.msra.mxu0 0.0
    %111 = vmatprep.subr.mxu0 0.0
    %112 = vmatpush1.msra.mxu0 0.0
    %113 = vmatprep.subr.mxu0 0.0
    %114 = vmatpush1.msra.mxu0 0.0
    %115 = vmatprep.subr.mxu0 0.0
    %116 = vmatpush1.msra.mxu0 0.0
    %117 = vmatprep.subr.mxu0 0.0
    %118 = vmatpush1.msra.mxu0 0.0
    %119 = vmatprep.subr.mxu0 0.0
    %120 = vmatpush1.msra.mxu0 0.0
    %121 = vmatprep.subr.mxu0 0.0
    %122 = vmatpush1.msra.mxu0 0.0
    %123 = vmatprep.subr.mxu0 0.0
    %124 = vmatpush1.msra.mxu0 0.0
    %125 = vmatprep.subr.mxu0 0.0
    %126 = vmatpush1.msra.mxu0 0.0
    %127 = vmatprep.subr.mxu0 0.0
    %128 = vmatpush1.msra.mxu0 0.0
    %129 = vmatprep.subr.mxu0 0.0
    %130 = vmatpush1.msra.mxu0 0.0
    %131 = vmatprep.mubr.f32.mxu0 0.0
    %132 = vmatmul.mubr.f32.gmra.mrb[0].mxu0 %v52
    %v133 = vpop.f32.mrb[0].mxu0
    %v134 = vadd.f32 %v33, %v133
    %v135 = vpop.f32.mrb[0].mxu0
    %136 = vmatprep.mubr.f32.mxu0 0.0
    %137 = vmatmul.mubr.f32.gmra.mrb[0].mxu0 %v55
    %v138 = vpop.f32.mrb[0].mxu0
    %v139 = vadd.f32 %v38, %v138
    %v140 = vpop.f32.mrb[0].mxu0
    %141 = vmatprep.mubr.f32.mxu0 0.0
    %142 = vmatmul.mubr.f32.gmra.mrb[0].mxu0 %v58
    %v143 = vpop.f32.mrb[0].mxu0
    %v144 = vadd.f32 %v43, %v143
    %v145 = vpop.f32.mrb[0].mxu0
    %146 = vmatprep.mubr.f32.mxu0 0.0
    %147 = vmatmul.mubr.f32.gmra.mrb[0].mxu0 %v61
    %v148 = vpop.f32.mrb[0].mxu0
    %v149 = vadd.f32 %v48, %v148
    %v150 = vpop.f32.mrb[0].mxu0
    %151 = vdwg.mxu0
    %v152 = vmax.f32 %v134, 0.0
    %v153 = vmax.f32 %v139, 0.0
    %v154 = vmax.f32 %v144, 0.0
    %v155 = vmax.f32 %v149, 0.0
    %v156 = vld [vmem:[%s3] sm:$0x3]
    %v157 = vld [vmem:[%s4] sm:$0x3]
    %159 = vset.pattern.permute.xlu0 0
    %160 = vperm.xlu0 %159, %v157
    %v161 = vpop.permute.xlu0 %160
    %vm163 = vcmask 261120
    %v165 = vsel %vm163, %v156, 0
    %167 = vmatprep.subr.mxu0 0.0
    %168 = vmatpush1.msra.mxu0 %v152
    %169 = vmatprep.subr.mxu0 0.0
    %170 = vmatpush1.msra.mxu0 %v153
    %171 = vmatprep.subr.mxu0 0.0
    %172 = vmatpush1.msra.mxu0 %v154
    %173 = vmatprep.subr.mxu0 0.0
    %174 = vmatpush1.msra.mxu0 %v155
    %175 = vmatprep.subr.mxu0 0.0
    %176 = vmatpush1.msra.mxu0 0.0
    %177 = vmatprep.subr.mxu0 0.0
    %178 = vmatpush1.msra.mxu0 0.0
    %179 = vmatprep.subr.mxu0 0.0
    %180 = vmatpush1.msra.mxu0 0.0
    %181 = vmatprep.subr.mxu0 0.0
    %182 = vmatpush1.msra.mxu0 0.0
    %183 = vmatprep.subr.mxu0 0.0
    %184 = vmatpush1.msra.mxu0 0.0
    %185 = vmatprep.subr.mxu0 0.0
    %186 = vmatpush1.msra.mxu0 0.0
    %187 = vmatprep.subr.mxu0 0.0
    %188 = vmatpush1.msra.mxu0 0.0
    %189 = vmatprep.subr.mxu0 0.0
    %190 = vmatpush1.msra.mxu0 0.0
    %191 = vmatprep.subr.mxu0 0.0
    %192 = vmatpush1.msra.mxu0 0.0
    %193 = vmatprep.subr.mxu0 0.0
    %194 = vmatpush1.msra.mxu0 0.0
    %195 = vmatprep.subr.mxu0 0.0
    %196 = vmatpush1.msra.mxu0 0.0
    %197 = vmatprep.subr.mxu0 0.0
    %198 = vmatpush1.msra.mxu0 0.0
    %199 = vmatprep.subr.mxu0 0.0
    %200 = vmatpush1.msra.mxu0 0.0
    %201 = vmatprep.subr.mxu0 0.0
    %202 = vmatpush1.msra.mxu0 0.0
    %203 = vmatprep.subr.mxu0 0.0
    %204 = vmatpush1.msra.mxu0 0.0
    %205 = vmatprep.subr.mxu0 0.0
    %206 = vmatpush1.msra.mxu0 0.0
    %207 = vmatprep.subr.mxu0 0.0
    %208 = vmatpush1.msra.mxu0 0.0
    %209 = vmatprep.subr.mxu0 0.0
    %210 = vmatpush1.msra.mxu0 0.0
    %211 = vmatprep.subr.mxu0 0.0
    %212 = vmatpush1.msra.mxu0 0.0
    %213 = vmatprep.subr.mxu0 0.0
    %214 = vmatpush1.msra.mxu0 0.0
    %215 = vmatprep.subr.mxu0 0.0
    %216 = vmatpush1.msra.mxu0 0.0
    %217 = vmatprep.subr.mxu0 0.0
    %218 = vmatpush1.msra.mxu0 0.0
    %219 = vmatprep.subr.mxu0 0.0
    %220 = vmatpush1.msra.mxu0 0.0
    %221 = vmatprep.subr.mxu0 0.0
    %222 = vmatpush1.msra.mxu0 0.0
    %223 = vmatprep.subr.mxu0 0.0
    %224 = vmatpush1.msra.mxu0 0.0
    %225 = vmatprep.subr.mxu0 0.0
    %226 = vmatpush1.msra.mxu0 0.0
    %227 = vmatprep.subr.mxu0 0.0
    %228 = vmatpush1.msra.mxu0 0.0
    %229 = vmatprep.subr.mxu0 0.0
    %230 = vmatpush1.msra.mxu0 0.0
    %231 = vmatprep.mubr.f32.mxu0 0.0
    %232 = vmatmul.mubr.f32.gmra.mrb[0].mxu0 %v165
    %v233 = vpop.f32.mrb[0].mxu0
    %v234 = vadd.f32 %v161, %v233
    %v235 = vpop.f32.mrb[0].mxu0
    %236 = vdwg.mxu0
    %vm237 = vcmask 58368
    %238 = vst.msk [vmem:[#allocation2] sm:$0x3] %vm237, %v234
    // Predicated region
    $region22: #{qnet_forward_t.1} parent=1 // pred_check
      _
    $region23: #{qnet_forward_t.1} parent=1 // pred_check_branch
      %240 = sbr.rel (0) target = $region25
    $region24: #{qnet_forward_t.1} parent=1 // pred_region
      %s242 = ssub.s32 32, 32
      %243 = vsyncadd [#allocation3], %s242
      %s245 = sshll.u32 [#allocation2], 4
      %s246 = int_to_ptr.vmem [resolvable:$true] %s245
      %248 = dma.vmem_to_hbm [thread:$0]  %s246, 32, %s5, [#allocation3]
    $region25: #{qnet_forward_t.1} parent=1 // pred_fallthru
      _
    // Predicated region
    $region26: #{qnet_forward_t.1} parent=1 // pred_check
      _
    $region27: #{qnet_forward_t.1} parent=1 // pred_check_branch
      %250 = sbr.rel (0) target = $region29
    $region28: #{qnet_forward_t.1} parent=1 // pred_region
      %251 = dma.done [#allocation3], 32
    $region29: #{qnet_forward_t.1} parent=1 // pred_fallthru
      _
    %252 = vsyncpa [#allocation3], 1

</llo_original>
